<compile_context>
chip_gen: v6e
topology: v6e:2x2x1
jax: 0.10.0
libtpu: 0.0.40
codegen_flags: <defaults>
</compile_context>

<pallas_src>
import jax
import jax.numpy as jnp
from jax.experimental import pallas as pl
from jax.experimental.pallas import tpu as pltpu


def _make_scalenorm_kernel(scale, eps):
    scale = float(scale)
    eps_sq = float(eps) * float(eps)

    def kernel(x_ref, o_ref):
        x = x_ref[...]
        xf = x.astype(jnp.float32)
        # Sum of squares over the lane axis, keepdim (f32 accumulation).
        sq = jnp.sum(xf * xf, axis=-1, keepdims=True)
        # max(sqrt(sq), eps) == sqrt(max(sq, eps^2)) since both are >= 0,
        # so the clamp + sqrt + divide collapse into one EUP rsqrt + one mul.
        inv = scale * jax.lax.rsqrt(jnp.maximum(sq, eps_sq))
        o_ref[...] = (x * inv.astype(x.dtype)).astype(o_ref.dtype)

    return kernel


def _pick_tile_rows(rows, hidden, itemsize):
    """Largest row tile with ~4 MiB per (tile_rows, hidden) buffer.

    With double-buffered input + output plus the f32 intermediates this stays
    comfortably inside every generation's scoped VMEM budget (incl. v7x's
    smaller 64 MiB physical / 32 MiB default), while making each grid step
    large enough that the ~0.35 us per-step overhead is negligible.
    """
    target_bytes = 4 * 1024 * 1024
    sublane_pack = 16 if itemsize == 2 else 8  # bf16 packs 2 rows/sublane
    t = max(target_bytes // max(hidden * itemsize, 1), sublane_pack)
    t = (t // sublane_pack) * sublane_pack
    t = min(t, 4096)
    if rows <= t:
        return rows  # single full-extent block along rows (always a valid block shape)
    return t         # multiple of 8 (16 for 2-byte dtypes)


def scale_norm(x, scale, eps=1e-5, *, tile_rows=None):
    """x: (..., hidden). Returns x * scale / clamp(||x||_2, eps) along last dim."""
    orig_shape = x.shape
    hidden = orig_shape[-1]
    x2d = x.reshape(-1, hidden)          # free (contiguous) view, no HBM copy
    rows = x2d.shape[0]

    if tile_rows is None:
        tile_rows = _pick_tile_rows(rows, hidden, x2d.dtype.itemsize)

    grid = (pl.cdiv(rows, tile_rows),)   # ragged last block handled by Pallas masking

    out = pl.pallas_call(
        _make_scalenorm_kernel(scale, eps),
        out_shape=jax.ShapeDtypeStruct((rows, hidden), x.dtype),
        grid=grid,
        in_specs=[pl.BlockSpec((tile_rows, hidden), lambda i: (i, 0))],
        out_specs=pl.BlockSpec((tile_rows, hidden), lambda i: (i, 0)),
        compiler_params=pltpu.CompilerParams(
            dimension_semantics=("parallel",),   # row grid shards across TCs (v7x)
            vmem_limit_bytes=64 << 20,           # lift v5e/v6e 16/32 MiB scoped default
        ),
    )(x2d)

    return out.reshape(orig_shape)


if __name__ == "__main__":
    key = jax.random.PRNGKey(0)
    batch, seq, hidden = 2, 8, 32
    # NOTE: hidden=32 (< 128 lanes) only for the small demo; real model sizes
    # should keep hidden a multiple of 128 for lane-dense (unmasked) stores.
    x = jax.random.normal(key, (batch, seq, hidden), dtype=jnp.float32)

    # Deterministic parameter init: ScaleNorm(scale=hidden**0.5) as in the
    # "transformers without tears" reference usage.
    scale_param = float(hidden) ** 0.5
    eps = 1e-5

    y = scale_norm(x, scale_param, eps)
    y = jax.block_until_ready(y)

    # Pure-JAX reference check (matches the PyTorch forward semantics).
    norm = jnp.linalg.norm(x, axis=-1, keepdims=True)
    ref = x * (scale_param / jnp.maximum(norm, eps))
    assert jnp.allclose(y, ref, atol=1e-5, rtol=1e-5), "mismatch vs reference"

    print("KERNEL_OK")
</pallas_src>

<mosaic_0001>
module attributes {stable_mosaic.version = 11 : i64} {
  func.func @kernel(%arg0: i32, %arg1: memref<16x32xf32, #tpu.memory_space<vmem>>, %arg2: memref<16x32xf32, #tpu.memory_space<vmem>>) attributes {dimension_semantics = [#tpu.dimension_semantics<parallel>], iteration_bounds = array<i64: 1>, scalar_prefetch = 0 : i64, scratch_operands = 0 : i64, tpu.core_type = #tpu.core_type<tc>, window_params = [{transform_indices = @transform_0, window_bounds = array<i64: 16, 32>}, {transform_indices = @transform_1, window_bounds = array<i64: 16, 32>}]} {
    %c0 = arith.constant 0 : index
    %c0_0 = arith.constant 0 : index
    %0 = vector.load %arg1[%c0, %c0_0] : memref<16x32xf32, #tpu.memory_space<vmem>>, vector<16x32xf32>
    %1 = arith.mulf %0, %0 : vector<16x32xf32>
    %cst = arith.constant dense<0.000000e+00> : vector<16xf32>
    %2 = vector.multi_reduction <add>, %1, %cst [1] : vector<16x32xf32> to vector<16xf32>
    %3 = vector.shape_cast %2 : vector<16xf32> to vector<16x1xf32>
    %cst_1 = arith.constant 1.000000e-10 : f32
    %4 = vector.broadcast %cst_1 : f32 to vector<16x1xf32>
    %5 = arith.maximumf %3, %4 : vector<16x1xf32>
    %6 = math.rsqrt %5 : vector<16x1xf32>
    %cst_2 = arith.constant 5.65685415 : f32
    %7 = vector.broadcast %cst_2 : f32 to vector<16x1xf32>
    %8 = arith.mulf %7, %6 : vector<16x1xf32>
    %9 = vector.broadcast %8 : vector<16x1xf32> to vector<16x32xf32>
    %10 = arith.mulf %0, %9 : vector<16x32xf32>
    %c0_3 = arith.constant 0 : index
    %c0_4 = arith.constant 0 : index
    %11 = vector.load %arg2[%c0_3, %c0_4] : memref<16x32xf32, #tpu.memory_space<vmem>>, vector<16x32xf32>
    tpu.vector_store %arg2[%c0_3, %c0_4], %10 {strides = array<i32>} : memref<16x32xf32, #tpu.memory_space<vmem>>, vector<16x32xf32>,
    return
  }
  func.func @transform_0(%arg0: i32) -> (i32, i32) {
    %c0_i32 = arith.constant 0 : i32
    %c0_i32_0 = arith.constant 0 : i32
    return %arg0, %c0_i32 : i32, i32
  }
  func.func @transform_1(%arg0: i32) -> (i32, i32) {
    %c0_i32 = arith.constant 0 : i32
    %c0_i32_0 = arith.constant 0 : i32
    return %arg0, %c0_i32 : i32, i32
  }
}

</mosaic_0001>

<llo_original>
// kernel: tpu_custom_call.1
$region0: #{tpu_custom_call.1}
  #allocation0 [shape = 'u32[]', space=smem, size = 0x4, offset = 0x4, fixed_abs, tag = 'smem constant byte address 0x4 - core index']
  #allocation1 [shape = 'u32[144,128]{1,0:T(1,128)}', space=vmem, size = 0x12000, scoped, tag = 'internal scratch']
  %s0 = inlined_call_operand.hbm [shape: f32[16,32], index: 0, kind: input, shape index: {}]
  %s1 = inlined_call_operand.hbm [shape: f32[16,32], index: 1, kind: output, shape index: {}]
  %s2 = sld [smem:[#allocation0]]
  $region18: #{tpu_custom_call.1} parent=0
    _
  %s4 = ssub.s32 1, %s2
  %s5 = scalar_select 0, %s4, %s2
  $region1: #{tpu_custom_call.1} parent=0
    #allocation2 [shape = 'u8[8192]{0}', space=vmem, size = 0x2000, scoped, tag = 'input window, operand 0, single buffered']
    #allocation3 [shape = 's32[1]{0}', space=sflag, size = 0x4, scoped, tag = 'scoped memory for tpu_custom_call.1']
    #allocation4 [shape = 's32[1]{0}', space=sflag, size = 0x4, scoped, tag = 'scoped memory for tpu_custom_call.1']
    #allocation5 [shape = 'u8[8192]{0}', space=vmem, size = 0x2000, scoped, tag = 'output window, operand 0, single buffered']
    %6 = vsyncpa [#allocation3], 0
    %7 = vsyncpa [#allocation4], 0
    // Predicated region
    $region2: #{tpu_custom_call.1} parent=1 // pred_check
      _
    $region3: #{tpu_custom_call.1} parent=1 // pred_check_branch
      %9 = sbr.rel (0) target = $region5
    $region4: #{tpu_custom_call.1} parent=1 // pred_region
      %s11 = ssub.s32 256, 256
      %12 = vsyncadd [#allocation3], %s11
      %s13 = sshll.u32 [#allocation2], 4
      %s14 = int_to_ptr.vmem [resolvable:$true] %s13
      %19 = dma.hbm_to_vmem [thread:$0]  %s0, 256, %s14, [#allocation3], 128, 128, 8
    $region5: #{tpu_custom_call.1} parent=1 // pred_fallthru
      _
    // Predicated region
    $region6: #{tpu_custom_call.1} parent=1 // pred_check
      _
    $region7: #{tpu_custom_call.1} parent=1 // pred_check_branch
      %21 = sbr.rel (0) target = $region9
    $region8: #{tpu_custom_call.1} parent=1 // pred_region
      %22 = dma.done [#allocation3], 256
    $region9: #{tpu_custom_call.1} parent=1 // pred_fallthru
      _
    %v23 = vld [vmem:[#allocation2] sm:$0xff]
    %v24 = vld [vmem:[#allocation2 + $0x8] sm:$0xff]
    %v25 = vmul.f32 %v23, %v23
    %v26 = vmul.f32 %v24, %v24
    %vm27 = vcmask 261120
    %v28 = vsel %vm27, %v25, 0.0
    %29 = vadd.xlane.f32.xlu0 %v28
    %v30 = vpop.xlane.xlu0 %29
    %v31 = vsel %vm27, %v26, 0.0
    %32 = vadd.xlane.f32.xlu0 %v31
    %v33 = vpop.xlane.xlu0 %32
    %v34 = vmax.f32 %v30, 1e-10
    %v35 = vmax.f32 %v33, 1e-10
    %v36 = vrsqrt.pop %v34
    %v37 = vrsqrt.pop %v35
    %v38 = vmul.f32 %v36, 5.656854
    %v39 = vmul.f32 %v37, 5.656854
    %v40 = vmul.f32 %v23, %v38
    %v41 = vmul.f32 %v24, %v39
    %42 = vst.msk [vmem:[#allocation5] sm:$0xff] %vm27, %v40
    %43 = vst.msk [vmem:[#allocation5 + $0x8] sm:$0xff] %vm27, %v41
    // Predicated region
    $region10: #{tpu_custom_call.1} parent=1 // pred_check
      _
    $region11: #{tpu_custom_call.1} parent=1 // pred_check_branch
      %45 = sbr.rel (0) target = $region13
    $region12: #{tpu_custom_call.1} parent=1 // pred_region
      %s47 = ssub.s32 256, 256
      %48 = vsyncadd [#allocation4], %s47
      %s49 = sshll.u32 [#allocation5], 4
      %s50 = int_to_ptr.vmem [resolvable:$true] %s49
      %55 = dma.vmem_to_hbm [thread:$0]  %s50, 256, %s1, [#allocation4], 128, 128, 8
    $region13: #{tpu_custom_call.1} parent=1 // pred_fallthru
      _
    // Predicated region
    $region14: #{tpu_custom_call.1} parent=1 // pred_check
      _
    $region15: #{tpu_custom_call.1} parent=1 // pred_check_branch
      %57 = sbr.rel (0) target = $region17
    $region16: #{tpu_custom_call.1} parent=1 // pred_region
      %58 = dma.done [#allocation4], 256
    $region17: #{tpu_custom_call.1} parent=1 // pred_fallthru
      _
    %59 = vsyncpa [#allocation3], 1
    %60 = vsyncpa [#allocation4], 1

</llo_original>
